<compile_context>
chip_gen: v5e
topology: v5e:2x2
jax: 0.10.0
libtpu: 0.0.40
codegen_flags: <defaults>
</compile_context>

<pallas_src>
import jax
import jax.numpy as jnp
from jax.experimental import pallas as pl
from jax.experimental.pallas import tpu as pltpu


def _rnn_cell_kernel(x_ref, h_ref, whx_ref, whh_ref, bh_ref,
                     wox_ref, woh_ref, bo_ref, out_ref, hid_ref):
    x = x_ref[...]                                            # [T, I]
    h = h_ref[...]                                            # [T, H]

    # hidden = i2h(cat(x, h))  == x @ Whx + h @ Whh + b_h
    hid_ref[...] = (jnp.dot(x, whx_ref[...], preferred_element_type=jnp.float32)
                    + jnp.dot(h, whh_ref[...], preferred_element_type=jnp.float32)
                    + bh_ref[...])                            # [T, H]

    # output = log_softmax(i2o(cat(x, h)))
    logits = (jnp.dot(x, wox_ref[...], preferred_element_type=jnp.float32)
              + jnp.dot(h, woh_ref[...], preferred_element_type=jnp.float32)
              + bo_ref[...])                                  # [T, O]
    m = jnp.max(logits, axis=-1, keepdims=True)
    shifted = logits - m
    lse = jnp.log(jnp.sum(jnp.exp(shifted), axis=-1, keepdims=True))
    out_ref[...] = shifted - lse                              # [T, O]


def rnn_forward(inp, hidden, params, *, tile_b=512):
    """inp: [B, input_size], hidden: [B, hidden_size].
    Returns (log_softmax_output [B, output_size], new_hidden [B, hidden_size])."""
    B, input_size = inp.shape
    Bh, hidden_size = hidden.shape
    assert B == Bh
    output_size = params["w_i2o"].shape[0]

    # Split + pre-transpose the Linear weights so torch.cat is fused into the dots.
    w_hx = params["w_i2h"][:, :input_size].T.astype(jnp.float32)     # [I, H]
    w_hh = params["w_i2h"][:, input_size:].T.astype(jnp.float32)     # [H, H]
    b_h = params["b_i2h"].reshape(1, hidden_size).astype(jnp.float32)
    w_ox = params["w_i2o"][:, :input_size].T.astype(jnp.float32)     # [I, O]
    w_oh = params["w_i2o"][:, input_size:].T.astype(jnp.float32)     # [H, O]
    b_o = params["b_i2o"].reshape(1, output_size).astype(jnp.float32)

    # Row tiling: pad batch to a sublane-aligned multiple of the row tile.
    pb = ((B + 7) // 8) * 8
    if pb >= tile_b:
        tile = tile_b
        pb = ((B + tile - 1) // tile) * tile
    else:
        tile = pb

    x_p = inp.astype(jnp.float32)
    h_p = hidden.astype(jnp.float32)
    if pb != B:
        x_p = jnp.pad(x_p, ((0, pb - B), (0, 0)))
        h_p = jnp.pad(h_p, ((0, pb - B), (0, 0)))

    grid = (pb // tile,)
    row = lambda i: (i, 0)      # activation tiles stream with the grid
    rep = lambda i: (0, 0)      # weights / biases stay resident

    out, new_hidden = pl.pallas_call(
        _rnn_cell_kernel,
        grid=grid,
        in_specs=[
            pl.BlockSpec((tile, input_size), row),
            pl.BlockSpec((tile, hidden_size), row),
            pl.BlockSpec((input_size, hidden_size), rep),
            pl.BlockSpec((hidden_size, hidden_size), rep),
            pl.BlockSpec((1, hidden_size), rep),
            pl.BlockSpec((input_size, output_size), rep),
            pl.BlockSpec((hidden_size, output_size), rep),
            pl.BlockSpec((1, output_size), rep),
        ],
        out_specs=[
            pl.BlockSpec((tile, output_size), row),
            pl.BlockSpec((tile, hidden_size), row),
        ],
        out_shape=[
            jax.ShapeDtypeStruct((pb, output_size), jnp.float32),
            jax.ShapeDtypeStruct((pb, hidden_size), jnp.float32),
        ],
        compiler_params=pltpu.CompilerParams(
            dimension_semantics=("parallel",),   # megacore sharding on v7x
        ),
    )(x_p, h_p, w_hx, w_hh, b_h, w_ox, w_oh, b_o)

    return out[:B], new_hidden[:B]


def init_params(key, input_size, hidden_size, output_size):
    """Matches PyTorch nn.Linear default init: U(-1/sqrt(fan_in), 1/sqrt(fan_in))."""
    fan_in = input_size + hidden_size
    k = 1.0 / jnp.sqrt(jnp.float32(fan_in))
    keys = jax.random.split(key, 4)

    def u(kk, shape):
        return jax.random.uniform(kk, shape, jnp.float32, -k, k)

    return {
        "w_i2h": u(keys[0], (hidden_size, fan_in)),
        "b_i2h": u(keys[1], (hidden_size,)),
        "w_i2o": u(keys[2], (output_size, fan_in)),
        "b_i2o": u(keys[3], (output_size,)),
    }


def _reference(inp, hidden, params):
    combined = jnp.concatenate([inp, hidden], axis=1)
    new_hidden = combined @ params["w_i2h"].T + params["b_i2h"]
    logits = combined @ params["w_i2o"].T + params["b_i2o"]
    return jax.nn.log_softmax(logits, axis=-1), new_hidden


if __name__ == "__main__":
    INPUT_SIZE = 16
    HIDDEN_SIZE = 32
    OUTPUT_SIZE = 8
    BATCH = 2

    key = jax.random.PRNGKey(0)
    k_params, k_x, k_h = jax.random.split(key, 3)
    params = init_params(k_params, INPUT_SIZE, HIDDEN_SIZE, OUTPUT_SIZE)
    x = jax.random.normal(k_x, (BATCH, INPUT_SIZE), dtype=jnp.float32)
    h0 = jnp.zeros((BATCH, HIDDEN_SIZE), dtype=jnp.float32)  # initHidden()

    out, h1 = rnn_forward(x, h0, params)
    jax.block_until_ready((out, h1))

    ref_out, ref_h1 = _reference(x, h0, params)
    assert out.shape == (BATCH, OUTPUT_SIZE)
    assert h1.shape == (BATCH, HIDDEN_SIZE)
    assert jnp.allclose(out, ref_out, atol=1e-5, rtol=1e-5)
    assert jnp.allclose(h1, ref_h1, atol=1e-5, rtol=1e-5)

    print("KERNEL_OK")
</pallas_src>

<mosaic_0001>
module attributes {stable_mosaic.version = 11 : i64} {
  func.func @_rnn_cell_kernel(%arg0: i32, %arg1: memref<8x16xf32, #tpu.memory_space<vmem>>, %arg2: memref<8x32xf32, #tpu.memory_space<vmem>>, %arg3: memref<16x32xf32, #tpu.memory_space<vmem>>, %arg4: memref<32x32xf32, #tpu.memory_space<vmem>>, %arg5: memref<1x32xf32, #tpu.memory_space<vmem>>, %arg6: memref<16x8xf32, #tpu.memory_space<vmem>>, %arg7: memref<32x8xf32, #tpu.memory_space<vmem>>, %arg8: memref<1x8xf32, #tpu.memory_space<vmem>>, %arg9: memref<8x8xf32, #tpu.memory_space<vmem>>, %arg10: memref<8x32xf32, #tpu.memory_space<vmem>>) attributes {dimension_semantics = [#tpu.dimension_semantics<parallel>], iteration_bounds = array<i64: 1>, scalar_prefetch = 0 : i64, scratch_operands = 0 : i64, tpu.core_type = #tpu.core_type<tc>, window_params = [{transform_indices = @transform_0, window_bounds = array<i64: 8, 16>}, {transform_indices = @transform_1, window_bounds = array<i64: 8, 32>}, {pipeline_mode = #tpu.pipeline_mode<synchronous>, transform_indices = @transform_2, window_bounds = array<i64: 16, 32>}, {pipeline_mode = #tpu.pipeline_mode<synchronous>, transform_indices = @transform_3, window_bounds = array<i64: 32, 32>}, {pipeline_mode = #tpu.pipeline_mode<synchronous>, transform_indices = @transform_4, window_bounds = array<i64: 1, 32>}, {pipeline_mode = #tpu.pipeline_mode<synchronous>, transform_indices = @transform_5, window_bounds = array<i64: 16, 8>}, {pipeline_mode = #tpu.pipeline_mode<synchronous>, transform_indices = @transform_6, window_bounds = array<i64: 32, 8>}, {pipeline_mode = #tpu.pipeline_mode<synchronous>, transform_indices = @transform_7, window_bounds = array<i64: 1, 8>}, {transform_indices = @transform_8, window_bounds = array<i64: 8, 8>}, {transform_indices = @transform_9, window_bounds = array<i64: 8, 32>}]} {
    %c0 = arith.constant 0 : index
    %c0_0 = arith.constant 0 : index
    %0 = vector.load %arg1[%c0, %c0_0] : memref<8x16xf32, #tpu.memory_space<vmem>>, vector<8x16xf32>
    %c0_1 = arith.constant 0 : index
    %c0_2 = arith.constant 0 : index
    %1 = vector.load %arg2[%c0_1, %c0_2] : memref<8x32xf32, #tpu.memory_space<vmem>>, vector<8x32xf32>
    %c0_3 = arith.constant 0 : index
    %c0_4 = arith.constant 0 : index
    %2 = vector.load %arg3[%c0_3, %c0_4] : memref<16x32xf32, #tpu.memory_space<vmem>>, vector<16x32xf32>
    %cst = arith.constant dense<0.000000e+00> : vector<8x32xf32>
    %3 = tpu.matmul %0, %2, %cst {dimension_numbers = #tpu.dot_dimension_numbers<[1], [0], [0], [1], [0, 0, 1, 1], [], []>} : vector<8x16xf32>, vector<16x32xf32>, vector<8x32xf32> -> vector<8x32xf32>
    %c0_5 = arith.constant 0 : index
    %c0_6 = arith.constant 0 : index
    %4 = vector.load %arg4[%c0_5, %c0_6] : memref<32x32xf32, #tpu.memory_space<vmem>>, vector<32x32xf32>
    %cst_7 = arith.constant dense<0.000000e+00> : vector<8x32xf32>
    %5 = tpu.matmul %1, %4, %cst_7 {dimension_numbers = #tpu.dot_dimension_numbers<[1], [0], [0], [1], [0, 0, 1, 1], [], []>} : vector<8x32xf32>, vector<32x32xf32>, vector<8x32xf32> -> vector<8x32xf32>
    %6 = arith.addf %3, %5 : vector<8x32xf32>
    %c0_8 = arith.constant 0 : index
    %c0_9 = arith.constant 0 : index
    %7 = vector.load %arg5[%c0_8, %c0_9] : memref<1x32xf32, #tpu.memory_space<vmem>>, vector<1x32xf32>
    %8 = vector.broadcast %7 : vector<1x32xf32> to vector<8x32xf32>
    %9 = arith.addf %6, %8 : vector<8x32xf32>
    %c0_10 = arith.constant 0 : index
    %c0_11 = arith.constant 0 : index
    %10 = vector.load %arg10[%c0_10, %c0_11] : memref<8x32xf32, #tpu.memory_space<vmem>>, vector<8x32xf32>
    tpu.vector_store %arg10[%c0_10, %c0_11], %9 {strides = array<i32>} : memref<8x32xf32, #tpu.memory_space<vmem>>, vector<8x32xf32>,
    %c0_12 = arith.constant 0 : index
    %c0_13 = arith.constant 0 : index
    %11 = vector.load %arg6[%c0_12, %c0_13] : memref<16x8xf32, #tpu.memory_space<vmem>>, vector<16x8xf32>
    %cst_14 = arith.constant dense<0.000000e+00> : vector<8x8xf32>
    %12 = tpu.matmul %0, %11, %cst_14 {dimension_numbers = #tpu.dot_dimension_numbers<[1], [0], [0], [1], [0, 0, 1, 1], [], []>} : vector<8x16xf32>, vector<16x8xf32>, vector<8x8xf32> -> vector<8x8xf32>
    %c0_15 = arith.constant 0 : index
    %c0_16 = arith.constant 0 : index
    %13 = vector.load %arg7[%c0_15, %c0_16] : memref<32x8xf32, #tpu.memory_space<vmem>>, vector<32x8xf32>
    %cst_17 = arith.constant dense<0.000000e+00> : vector<8x8xf32>
    %14 = tpu.matmul %1, %13, %cst_17 {dimension_numbers = #tpu.dot_dimension_numbers<[1], [0], [0], [1], [0, 0, 1, 1], [], []>} : vector<8x32xf32>, vector<32x8xf32>, vector<8x8xf32> -> vector<8x8xf32>
    %15 = arith.addf %12, %14 : vector<8x8xf32>
    %c0_18 = arith.constant 0 : index
    %c0_19 = arith.constant 0 : index
    %16 = vector.load %arg8[%c0_18, %c0_19] : memref<1x8xf32, #tpu.memory_space<vmem>>, vector<1x8xf32>
    %17 = vector.broadcast %16 : vector<1x8xf32> to vector<8x8xf32>
    %18 = arith.addf %15, %17 : vector<8x8xf32>
    %cst_20 = arith.constant dense<0xFF800000> : vector<8xf32>
    %19 = vector.multi_reduction <maximumf>, %18, %cst_20 [1] : vector<8x8xf32> to vector<8xf32>
    %20 = vector.shape_cast %19 : vector<8xf32> to vector<8x1xf32>
    %21 = vector.broadcast %20 : vector<8x1xf32> to vector<8x8xf32>
    %22 = arith.subf %18, %21 : vector<8x8xf32>
    %23 = math.exp %22 : vector<8x8xf32>
    %cst_21 = arith.constant dense<0.000000e+00> : vector<8xf32>
    %24 = vector.multi_reduction <add>, %23, %cst_21 [1] : vector<8x8xf32> to vector<8xf32>
    %25 = vector.shape_cast %24 : vector<8xf32> to vector<8x1xf32>
    %26 = math.log %25 : vector<8x1xf32>
    %27 = vector.broadcast %26 : vector<8x1xf32> to vector<8x8xf32>
    %28 = arith.subf %22, %27 : vector<8x8xf32>
    %c0_22 = arith.constant 0 : index
    %c0_23 = arith.constant 0 : index
    %29 = vector.load %arg9[%c0_22, %c0_23] : memref<8x8xf32, #tpu.memory_space<vmem>>, vector<8x8xf32>
    tpu.vector_store %arg9[%c0_22, %c0_23], %28 {strides = array<i32>} : memref<8x8xf32, #tpu.memory_space<vmem>>, vector<8x8xf32>,
    return
  }
  func.func @transform_0(%arg0: i32) -> (i32, i32) {
    %c0_i32 = arith.constant 0 : i32
    %c0_i32_0 = arith.constant 0 : i32
    return %arg0, %c0_i32 : i32, i32
  }
  func.func @transform_1(%arg0: i32) -> (i32, i32) {
    %c0_i32 = arith.constant 0 : i32
    %c0_i32_0 = arith.constant 0 : i32
    return %arg0, %c0_i32 : i32, i32
  }
  func.func @transform_2(%arg0: i32) -> (i32, i32) {
    %c0_i32 = arith.constant 0 : i32
    %c0_i32_0 = arith.constant 0 : i32
    %c0_i32_1 = arith.constant 0 : i32
    return %c0_i32, %c0_i32_0 : i32, i32
  }
  func.func @transform_3(%arg0: i32) -> (i32, i32) {
    %c0_i32 = arith.constant 0 : i32
    %c0_i32_0 = arith.constant 0 : i32
    %c0_i32_1 = arith.constant 0 : i32
    return %c0_i32, %c0_i32_0 : i32, i32
  }
  func.func @transform_4(%arg0: i32) -> (i32, i32) {
    %c0_i32 = arith.constant 0 : i32
    %c0_i32_0 = arith.constant 0 : i32
    %c0_i32_1 = arith.constant 0 : i32
    return %c0_i32, %c0_i32_0 : i32, i32
  }
  func.func @transform_5(%arg0: i32) -> (i32, i32) {
    %c0_i32 = arith.constant 0 : i32
    %c0_i32_0 = arith.constant 0 : i32
    %c0_i32_1 = arith.constant 0 : i32
    return %c0_i32, %c0_i32_0 : i32, i32
  }
  func.func @transform_6(%arg0: i32) -> (i32, i32) {
    %c0_i32 = arith.constant 0 : i32
    %c0_i32_0 = arith.constant 0 : i32
    %c0_i32_1 = arith.constant 0 : i32
    return %c0_i32, %c0_i32_0 : i32, i32
  }
  func.func @transform_7(%arg0: i32) -> (i32, i32) {
    %c0_i32 = arith.constant 0 : i32
    %c0_i32_0 = arith.constant 0 : i32
    %c0_i32_1 = arith.constant 0 : i32
    return %c0_i32, %c0_i32_0 : i32, i32
  }
  func.func @transform_8(%arg0: i32) -> (i32, i32) {
    %c0_i32 = arith.constant 0 : i32
    %c0_i32_0 = arith.constant 0 : i32
    return %arg0, %c0_i32 : i32, i32
  }
  func.func @transform_9(%arg0: i32) -> (i32, i32) {
    %c0_i32 = arith.constant 0 : i32
    %c0_i32_0 = arith.constant 0 : i32
    return %arg0, %c0_i32 : i32, i32
  }
}

</mosaic_0001>

<llo_original>
// kernel: tpu_custom_call.1
$region0: #{tpu_custom_call.1}
  #allocation0 [shape = 'u32[]', space=smem, size = 0x4, offset = 0x4, fixed_abs, tag = 'smem constant byte address 0x4 - core index']
  #allocation1 [shape = 'u32[72,128]{1,0:T(1,128)}', space=vmem, size = 0x9000, scoped, tag = 'internal scratch']
  %s0 = inlined_call_operand.vmem [shape: f32[8,16], index: 0, kind: input, shape index: {}]
  %s1 = inlined_call_operand.hbm [shape: f32[8,32], index: 1, kind: input, shape index: {}]
  %s2 = inlined_call_operand.vmem [shape: f32[16,32], index: 2, kind: input, shape index: {}]
  %s3 = inlined_call_operand.vmem [shape: f32[32,32], index: 3, kind: input, shape index: {}]
  %s4 = inlined_call_operand.vmem [shape: f32[1,32], index: 4, kind: input, shape index: {}]
  %s5 = inlined_call_operand.vmem [shape: f32[16,8], index: 5, kind: input, shape index: {}]
  %s6 = inlined_call_operand.vmem [shape: f32[32,8], index: 6, kind: input, shape index: {}]
  %s7 = inlined_call_operand.vmem [shape: f32[1,8], index: 7, kind: input, shape index: {}]
  %s8 = inlined_call_operand.hbm [shape: f32[8,8], index: 8, kind: output, shape index: {0}]
  %s9 = inlined_call_operand.hbm [shape: f32[8,32], index: 9, kind: output, shape index: {1}]
  %10 = xla_tuple %s8, %s9
  %s11 = sld [smem:[#allocation0]]
  $region54: #{tpu_custom_call.1} parent=0
    _
  %s13 = ssub.s32 1, %s11
  %s14 = scalar_select 0, %s13, %s11
  $region1: #{tpu_custom_call.1} parent=0
    #allocation2 [shape = 'u8[4096]{0}', space=vmem, size = 0x1000, scoped, tag = 'input window, operand 1, single buffered']
    #allocation3 [shape = 's32[1]{0}', space=sflag, size = 0x4, scoped, tag = 'scoped memory for tpu_custom_call.1']
    #allocation4 [shape = 's32[1]{0}', space=sflag, size = 0x4, scoped, tag = 'scoped memory for tpu_custom_call.1']
    #allocation5 [shape = 'u8[4096]{0}', space=vmem, size = 0x1000, scoped, tag = 'output window, operand 0, single buffered']
    #allocation6 [shape = 'u8[4096]{0}', space=vmem, size = 0x1000, scoped, tag = 'output window, operand 1, single buffered']
    #allocation7 [shape = 's32[1]{0}', space=sflag, size = 0x4, scoped, tag = 'scoped memory for tpu_custom_call.1']
    %15 = vsyncpa [#allocation3], 0
    %16 = vsyncpa [#allocation4], 0
    %17 = vsyncpa [#allocation7], 0
    // Predicated region
    $region2: #{tpu_custom_call.1} parent=1 // pred_check
      _
    $region3: #{tpu_custom_call.1} parent=1 // pred_check_branch
      %19 = sbr.rel (0) target = $region5
    $region4: #{tpu_custom_call.1} parent=1 // pred_region
      _
    $region5: #{tpu_custom_call.1} parent=1 // pred_fallthru
      _
    // Predicated region
    $region6: #{tpu_custom_call.1} parent=1 // pred_check
      _
    $region7: #{tpu_custom_call.1} parent=1 // pred_check_branch
      %21 = sbr.rel (0) target = $region9
    $region8: #{tpu_custom_call.1} parent=1 // pred_region
      %23 = vsyncadd [#allocation3], 0
      %s25 = sshll.u32 %s1, 4
      %s26 = int_to_ptr.hbm [resolvable:$true] %s25
      %s27 = sshll.u32 [#allocation2], 4
      %s28 = int_to_ptr.vmem [resolvable:$true] %s27
      %30 = dma.hbm_to_vmem [thread:$0]  %s26, 128, %s28, [#allocation3]
    $region9: #{tpu_custom_call.1} parent=1 // pred_fallthru
      _
    // Predicated region
    $region10: #{tpu_custom_call.1} parent=1 // pred_check
      _
    $region11: #{tpu_custom_call.1} parent=1 // pred_check_branch
      %32 = sbr.rel (0) target = $region13
    $region12: #{tpu_custom_call.1} parent=1 // pred_region
      _
    $region13: #{tpu_custom_call.1} parent=1 // pred_fallthru
      _
    // Predicated region
    $region14: #{tpu_custom_call.1} parent=1 // pred_check
      _
    $region15: #{tpu_custom_call.1} parent=1 // pred_check_branch
      %34 = sbr.rel (0) target = $region17
    $region16: #{tpu_custom_call.1} parent=1 // pred_region
      _
    $region17: #{tpu_custom_call.1} parent=1 // pred_fallthru
      _
    // Predicated region
    $region18: #{tpu_custom_call.1} parent=1 // pred_check
      _
    $region19: #{tpu_custom_call.1} parent=1 // pred_check_branch
      %36 = sbr.rel (0) target = $region21
    $region20: #{tpu_custom_call.1} parent=1 // pred_region
      _
    $region21: #{tpu_custom_call.1} parent=1 // pred_fallthru
      _
    // Predicated region
    $region22: #{tpu_custom_call.1} parent=1 // pred_check
      _
    $region23: #{tpu_custom_call.1} parent=1 // pred_check_branch
      %38 = sbr.rel (0) target = $region25
    $region24: #{tpu_custom_call.1} parent=1 // pred_region
      _
    $region25: #{tpu_custom_call.1} parent=1 // pred_fallthru
      _
    // Predicated region
    $region26: #{tpu_custom_call.1} parent=1 // pred_check
      _
    $region27: #{tpu_custom_call.1} parent=1 // pred_check_branch
      %40 = sbr.rel (0) target = $region29
    $region28: #{tpu_custom_call.1} parent=1 // pred_region
      _
    $region29: #{tpu_custom_call.1} parent=1 // pred_fallthru
      _
    // Predicated region
    $region30: #{tpu_custom_call.1} parent=1 // pred_check
      _
    $region31: #{tpu_custom_call.1} parent=1 // pred_check_branch
      %42 = sbr.rel (0) target = $region33
    $region32: #{tpu_custom_call.1} parent=1 // pred_region
      _
    $region33: #{tpu_custom_call.1} parent=1 // pred_fallthru
      _
    // Predicated region
    $region34: #{tpu_custom_call.1} parent=1 // pred_check
      _
    $region35: #{tpu_custom_call.1} parent=1 // pred_check_branch
      %44 = sbr.rel (0) target = $region37
    $region36: #{tpu_custom_call.1} parent=1 // pred_region
      %46 = dma.done [#allocation3], 128
    $region37: #{tpu_custom_call.1} parent=1 // pred_fallthru
      _
    %v47 = vld [vmem:[%s0] sm:$0xff]
    %v48 = vld [vmem:[#allocation2] sm:$0xff]
    %v49 = vld [vmem:[%s2] sm:$0xff]
    %v50 = vld [vmem:[%s2 + $0x8] sm:$0xff]
    %v51 = vld [vmem:[%s3] sm:$0xff]
    %v52 = vld [vmem:[%s3 + $0x8] sm:$0xff]
    %v53 = vld [vmem:[%s3 + $0x10] sm:$0xff]
    %v54 = vld [vmem:[%s3 + $0x18] sm:$0xff]
    %vm55 = vcmask 261120
    %v57 = vsel %vm55, %v48, 0
    %59 = vmatpush.msra.mxu0 0.0
    %60 = vmatpush.msra.mxu0 0.0
    %61 = vmatpush.msra.mxu0 0.0
    %62 = vmatpush.msra.mxu0 0.0
    %63 = vmatpush.msra.mxu0 0.0
    %64 = vmatpush.msra.mxu0 0.0
    %65 = vmatpush.msra.mxu0 0.0
    %66 = vmatpush.msra.mxu0 0.0
    %67 = vmatpush.msra.mxu0 0.0
    %68 = vmatpush.msra.mxu0 0.0
    %69 = vmatpush.msra.mxu0 0.0
    %70 = vmatpush.msra.mxu0 0.0
    %71 = vmatpush.msra.mxu0 %v54
    %72 = vmatpush.msra.mxu0 %v53
    %73 = vmatpush.msra.mxu0 %v52
    %74 = vmatpush.msra.mxu0 %v51
    %75 = vmatmul.f32.gmra.mxu0 %v57
    %v76 = vpop.f32.mrf.mxu0
    %v77 = vadd.f32 0.0, %v76
    %78 = vdwg.mxu0
    %vm79 = vcmask 130048
    %v81 = vsel %vm79, %v47, 0
    %83 = vmatpush.msra.mxu0 0.0
    %84 = vmatpush.msra.mxu0 0.0
    %85 = vmatpush.msra.mxu0 0.0
    %86 = vmatpush.msra.mxu0 0.0
    %87 = vmatpush.msra.mxu0 0.0
    %88 = vmatpush.msra.mxu0 0.0
    %89 = vmatpush.msra.mxu0 0.0
    %90 = vmatpush.msra.mxu0 0.0
    %91 = vmatpush.msra.mxu0 0.0
    %92 = vmatpush.msra.mxu0 0.0
    %93 = vmatpush.msra.mxu0 0.0
    %94 = vmatpush.msra.mxu0 0.0
    %95 = vmatpush.msra.mxu0 0.0
    %96 = vmatpush.msra.mxu0 0.0
    %97 = vmatpush.msra.mxu0 %v50
    %98 = vmatpush.msra.mxu0 %v49
    %99 = vmatmul.f32.gmra.mxu0 %v81
    %v100 = vpop.f32.mrf.mxu0
    %v101 = vadd.f32 %v77, %v100
    %102 = vdwg.mxu0
    %v103 = vld [vmem:[%s4] sm:$0x1]
    %v105 = vperm.slane %v103, 0
    %v107 = vadd.f32 %v101, %v105
    %108 = vst.msk [vmem:[#allocation6] sm:$0xff] %vm55, %v107
    %v109 = vld [vmem:[%s5] sm:$0xff]
    %v110 = vld [vmem:[%s5 + $0x8] sm:$0xff]
    %v111 = vld [vmem:[%s6] sm:$0xff]
    %v112 = vld [vmem:[%s6 + $0x8] sm:$0xff]
    %v113 = vld [vmem:[%s6 + $0x10] sm:$0xff]
    %v114 = vld [vmem:[%s6 + $0x18] sm:$0xff]
    %115 = vmatpush.msra.mxu0 0.0
    %116 = vmatpush.msra.mxu0 0.0
    %117 = vmatpush.msra.mxu0 0.0
    %118 = vmatpush.msra.mxu0 0.0
    %119 = vmatpush.msra.mxu0 0.0
    %120 = vmatpush.msra.mxu0 0.0
    %121 = vmatpush.msra.mxu0 0.0
    %122 = vmatpush.msra.mxu0 0.0
    %123 = vmatpush.msra.mxu0 0.0
    %124 = vmatpush.msra.mxu0 0.0
    %125 = vmatpush.msra.mxu0 0.0
    %126 = vmatpush.msra.mxu0 0.0
    %127 = vmatpush.msra.mxu0 %v114
    %128 = vmatpush.msra.mxu0 %v113
    %129 = vmatpush.msra.mxu0 %v112
    %130 = vmatpush.msra.mxu0 %v111
    %131 = vmatmul.f32.gmra.mxu0 %v57
    %v132 = vpop.f32.mrf.mxu0
    %v133 = vadd.f32 0.0, %v132
    %134 = vdwg.mxu0
    %135 = vmatpush.msra.mxu0 0.0
    %136 = vmatpush.msra.mxu0 0.0
    %137 = vmatpush.msra.mxu0 0.0
    %138 = vmatpush.msra.mxu0 0.0
    %139 = vmatpush.msra.mxu0 0.0
    %140 = vmatpush.msra.mxu0 0.0
    %141 = vmatpush.msra.mxu0 0.0
    %142 = vmatpush.msra.mxu0 0.0
    %143 = vmatpush.msra.mxu0 0.0
    %144 = vmatpush.msra.mxu0 0.0
    %145 = vmatpush.msra.mxu0 0.0
    %146 = vmatpush.msra.mxu0 0.0
    %147 = vmatpush.msra.mxu0 0.0
    %148 = vmatpush.msra.mxu0 0.0
    %149 = vmatpush.msra.mxu0 %v110
    %150 = vmatpush.msra.mxu0 %v109
    %151 = vmatmul.f32.gmra.mxu0 %v81
    %v152 = vpop.f32.mrf.mxu0
    %v153 = vadd.f32 %v133, %v152
    %154 = vdwg.mxu0
    %v155 = vld [vmem:[%s7] sm:$0x1]
    %v157 = vperm.slane %v155, 0
    %v159 = vadd.f32 %v153, %v157
    %vm160 = vcmask 64512
    %v161 = vsel %vm160, %v159, -inf
    %162 = vmax.xlane.f32.xlu0 %v161
    %v163 = vpop.xlane.xlu0 %162
    %v164 = vsub.f32 %v159, %v163
    %v165 = vmul.f32 %v164, 1.442695
    %v166 = vpow.pop %v165
    %v167 = vsel %vm160, %v166, 0.0
    %168 = vadd.xlane.f32.xlu0 %v167
    %v169 = vpop.xlane.xlu0 %168
    %v170 = vlog2.pop %v169
    %v171 = vmul.f32 %v170, 0.6931472
    %v172 = vsub.f32 %v164, %v171
    %173 = vst.msk [vmem:[#allocation5] sm:$0xff] %vm160, %v172
    // Predicated region
    $region38: #{tpu_custom_call.1} parent=1 // pred_check
      _
    $region39: #{tpu_custom_call.1} parent=1 // pred_check_branch
      %175 = sbr.rel (0) target = $region41
    $region40: #{tpu_custom_call.1} parent=1 // pred_region
      %177 = vsyncadd [#allocation4], 0
      %s179 = sshll.u32 [#allocation5], 4
      %s180 = int_to_ptr.vmem [resolvable:$true] %s179
      %s181 = sshll.u32 %s8, 4
      %s182 = int_to_ptr.hbm [resolvable:$true] %s181
      %184 = dma.vmem_to_hbm [thread:$0]  %s180, 128, %s182, [#allocation4]
    $region41: #{tpu_custom_call.1} parent=1 // pred_fallthru
      _
    // Predicated region
    $region42: #{tpu_custom_call.1} parent=1 // pred_check
      _
    $region43: #{tpu_custom_call.1} parent=1 // pred_check_branch
      %186 = sbr.rel (0) target = $region45
    $region44: #{tpu_custom_call.1} parent=1 // pred_region
      %188 = vsyncadd [#allocation7], 0
      %s190 = sshll.u32 [#allocation6], 4
      %s191 = int_to_ptr.vmem [resolvable:$true] %s190
      %s192 = sshll.u32 %s9, 4
      %s193 = int_to_ptr.hbm [resolvable:$true] %s192
      %195 = dma.vmem_to_hbm [thread:$0]  %s191, 128, %s193, [#allocation7]
    $region45: #{tpu_custom_call.1} parent=1 // pred_fallthru
      _
    // Predicated region
    $region46: #{tpu_custom_call.1} parent=1 // pred_check
      _
    $region47: #{tpu_custom_call.1} parent=1 // pred_check_branch
      %197 = sbr.rel (0) target = $region49
    $region48: #{tpu_custom_call.1} parent=1 // pred_region
      %199 = dma.done [#allocation4], 128
    $region49: #{tpu_custom_call.1} parent=1 // pred_fallthru
      _
    // Predicated region
    $region50: #{tpu_custom_call.1} parent=1 // pred_check
      _
    $region51: #{tpu_custom_call.1} parent=1 // pred_check_branch
      %201 = sbr.rel (0) target = $region53
    $region52: #{tpu_custom_call.1} parent=1 // pred_region
      %203 = dma.done [#allocation7], 128
    $region53: #{tpu_custom_call.1} parent=1 // pred_fallthru
      _
    %204 = vsyncpa [#allocation3], 1
    %205 = vsyncpa [#allocation4], 1
    %206 = vsyncpa [#allocation7], 1

</llo_original>
